<compile_context>
chip_gen: v7x
topology: tpu7x:2x2x1
jax: 0.10.0
libtpu: 0.0.40
codegen_flags: <defaults>
</compile_context>

<pallas_src>
import numpy as np
import jax
import jax.numpy as jnp
from jax.experimental import pallas as pl
from jax.experimental.pallas import tpu as pltpu


def _round_up(x, m):
    return ((x + m - 1) // m) * m


def _cdiv(a, b):
    return -(-a // b)


def _stft_kernel(frames_ref, basis_ref, out_ref):
    # frames_ref: (TM, L) ; basis_ref: (L, TN) ; out_ref: (TM, TN) f32
    out_ref[...] = jnp.dot(frames_ref[...], basis_ref[...],
                           preferred_element_type=jnp.float32)


def _choose_tiles(M, L, W, bytes_per_elem):
    """Pick (TM, TN, M_pad).

    Keeps the fused DFT basis fully VMEM-resident whenever it fits a
    conservative budget (safe on v7x's 64 MiB VMEM), bounds dead-row padding,
    and guarantees >=2 row tiles when possible so both v7x TensorCores get work.
    """
    M8 = _round_up(max(M, 1), 8)

    # -- column tile: fully-resident basis unless it would blow VMEM ----------
    basis_budget = 16 * 1024 * 1024           # conservative (double-buffer counted)
    n128 = W // 128
    TN = W
    if 2 * L * W * bytes_per_elem > basis_budget:
        TN = 128
        for d in range(n128, 0, -1):          # largest divisor of W that fits
            if n128 % d == 0 and 2 * L * 128 * d * bytes_per_elem <= basis_budget:
                TN = 128 * d
                break

    # -- row tile: as big as the budget allows, then refined -------------------
    row_budget = 16 * 1024 * 1024             # double-buffered frames + f32 out tiles
    TM = 512
    while TM > 8 and (2 * TM * (L * bytes_per_elem + TN * 4) > row_budget or TM > M8):
        TM //= 2
    # at least two row tiles (v7x has 2 TensorCores) when there is enough work
    while TM > 8 and M8 >= 16 and _cdiv(M8, TM) < 2:
        TM //= 2
    # bound dead-row padding waste to ~1/6 of the padded extent
    while TM > 8 and (_round_up(M8, TM) - M8) * 6 > _round_up(M8, TM):
        TM //= 2

    M_pad = _round_up(M8, TM)
    return TM, TN, M_pad


def stft_pallas(signal, win_len, win_shift_ratio, nfft, win='hann',
                compute_dtype=jnp.bfloat16):
    """signal: (nb, nsample, nch) float32 -> (nb, nf, nt, nch) complex64.

    Matches the PyTorch STFT module (center=False, normalized=False, periodic
    Hann). compute_dtype=jnp.float32 gives tighter parity at extra MXU cost.
    """
    assert win_len == nfft, "module semantics only consistent when win_len == nfft"
    nb, nsample, nch = signal.shape
    # NOTE: float-truncation hop matches the PyTorch module exactly
    # (intentionally fragile for ratios like 0.1, same as the module).
    win_shift = int(win_len * win_shift_ratio)
    assert win_shift > 0
    assert nsample >= win_len
    nf = nfft // 2 + 1
    nt = int(np.floor((nsample - win_len) / win_shift + 1))
    bpe = np.dtype(compute_dtype).itemsize

    # ---------- windowed DFT basis: fused (cos || -sin), jointly lane-padded --
    n = np.arange(win_len, dtype=np.float64)
    if win == 'hann':
        window = 0.5 - 0.5 * np.cos(2.0 * np.pi * n / win_len)    # periodic hann
    elif win == 'boxcar':
        window = np.ones(win_len, dtype=np.float64)
    else:
        raise ValueError(win)
    f_idx = np.arange(nf, dtype=np.float64)
    ang = 2.0 * np.pi * np.outer(n, f_idx) / nfft                  # (L, nf)
    W = _round_up(2 * nf, 128)                                     # joint re|im padding
    basis_np = np.zeros((win_len, W), dtype=np.float32)
    basis_np[:, :nf] = window[:, None] * np.cos(ang)
    basis_np[:, nf:2 * nf] = -window[:, None] * np.sin(ang)        # rfft: exp(-i.)
    basis = jnp.asarray(basis_np).astype(compute_dtype)            # (L, W)

    # ---------- framing without gather: hop-chunk slicing ---------------------
    # Channel-major so frame rows are ordered (b, ch, t) and reshapes stay
    # contiguous; this is the only wrapper-side layout pass on the input.
    sig_t = jnp.transpose(signal, (0, 2, 1))                       # (nb, nch, nsample)
    M = nb * nch * nt
    if win_len % win_shift == 0:
        # frame t = concat_k chunk[t + k]; pure slice/reshape/concat (no gather).
        nchunks = win_len // win_shift
        n_need = (nt + nchunks - 1) * win_shift                    # <= nsample by def of nt
        chunks = sig_t[:, :, :n_need].reshape(nb, nch, nt + nchunks - 1, win_shift)
        frames = jnp.concatenate(
            [chunks[:, :, k:k + nt, :] for k in range(nchunks)], axis=-1)
    else:
        # TODO(synk): hop not dividing win_len falls back to an XLA gather;
        # fuse framing into the kernel via manual DMA if this path matters.
        idx = (np.arange(nt)[:, None] * win_shift +
               np.arange(win_len)[None, :]).astype(np.int32)
        frames = jnp.take(sig_t, jnp.asarray(idx), axis=2)
    frames = frames.reshape(M, win_len).astype(compute_dtype)      # (M, L)

    # ---------- tiling ---------------------------------------------------------
    TM, TN, M_pad = _choose_tiles(M, win_len, W, bpe)
    if M_pad > M:
        frames = jnp.pad(frames, ((0, M_pad - M), (0, 0)))
    n_rows = M_pad // TM
    n_cols = W // TN

    # ---------- hot path: row-tiled matmul with HBM-read-once resident basis --
    out = pl.pallas_call(
        _stft_kernel,
        out_shape=jax.ShapeDtypeStruct((M_pad, W), jnp.float32),
        grid_spec=pltpu.PrefetchScalarGridSpec(
            num_scalar_prefetch=0,
            # Column axis OUTER (usually size 1): the basis block index is then
            # constant across every inner (row) step -> fetched from HBM once.
            grid=(n_cols, n_rows),
            in_specs=[
                pl.BlockSpec((TM, win_len), lambda j, i: (i, 0)),
                pl.BlockSpec((win_len, TN), lambda j, i: (0, j)),
            ],
            out_specs=pl.BlockSpec((TM, TN), lambda j, i: (i, j)),
        ),
        compiler_params=pltpu.CompilerParams(
            dimension_semantics=("parallel", "parallel"),
            vmem_limit_bytes=48 * 1024 * 1024),   # safe on v5e/v6e (128MiB) and v7x (64MiB)
    )(frames, basis)

    # ---------- assemble complex output in the module's layout -----------------
    out = out[:M].reshape(nb, nch, nt, W)
    stft_bcn = jax.lax.complex(out[..., :nf], out[..., nf:2 * nf])  # complex64 already
    # TODO(synk): Pallas TPU has no complex dtype; re|im split + final
    # permutation remain as a single fused XLA copy in the wrapper.
    return jnp.transpose(stft_bcn, (0, 3, 2, 1))                    # (nb, nf, nt, nch)


def _reference_stft(signal, win_len, win_shift_ratio, nfft, win='hann'):
    """NumPy reference with identical framing / window / one-sided spectrum."""
    sig = np.asarray(signal, dtype=np.float64)
    nb, nsample, nch = sig.shape
    hop = int(win_len * win_shift_ratio)
    nt = int(np.floor((nsample - win_len) / hop + 1))
    n = np.arange(win_len)
    if win == 'hann':
        window = 0.5 - 0.5 * np.cos(2.0 * np.pi * n / win_len)
    else:
        window = np.ones(win_len)
    idx = np.arange(nt)[:, None] * hop + np.arange(win_len)[None, :]
    frames = sig[:, idx, :]                                         # (nb, nt, L, nch)
    spec = np.fft.rfft(frames * window[None, None, :, None], n=nfft, axis=2)
    return np.transpose(spec, (0, 2, 1, 3)).astype(np.complex64)    # (nb, nf, nt, nch)


if __name__ == "__main__":
    key = jax.random.PRNGKey(0)
    cases = [
        # tiny demo shape (nt=8, M=64) and a tiled shape exercising multi-row-tile,
        # row padding and nf-not-multiple-of-128 joint padding (nt=83, M=664).
        dict(win_len=16, nfft=16, ratio=0.5, nb=2, nsample=72, nch=4),
        dict(win_len=256, nfft=256, ratio=0.5, nb=2, nsample=10752, nch=4),
    ]
    for c in cases:
        key, sub = jax.random.split(key)
        signal = jax.random.normal(sub, (c['nb'], c['nsample'], c['nch']),
                                   dtype=jnp.float32)
        out = stft_pallas(signal, c['win_len'], c['ratio'], c['nfft'], win='hann')
        out = jax.block_until_ready(out)

        ref = _reference_stft(signal, c['win_len'], c['ratio'], c['nfft'], win='hann')
        hop = int(c['win_len'] * c['ratio'])
        nt = int(np.floor((c['nsample'] - c['win_len']) / hop + 1))
        nf = c['nfft'] // 2 + 1
        assert out.shape == (c['nb'], nf, nt, c['nch'])
        assert out.dtype == jnp.complex64
        # bf16 inputs with f32 accumulation: tolerance scales ~sqrt(win_len).
        atol = 2e-2 * float(np.sqrt(c['win_len']))
        np.testing.assert_allclose(np.asarray(out), ref, rtol=5e-2, atol=atol)

    print("KERNEL_OK")
</pallas_src>

<mosaic_0001>
module attributes {stable_mosaic.version = 11 : i64} {
  func.func @_stft_kernel(%arg0: i32, %arg1: i32, %arg2: memref<32x16xbf16, #tpu.memory_space<vmem>>, %arg3: memref<16x128xbf16, #tpu.memory_space<vmem>>, %arg4: memref<32x128xf32, #tpu.memory_space<vmem>>) attributes {dimension_semantics = [#tpu.dimension_semantics<parallel>, #tpu.dimension_semantics<parallel>], iteration_bounds = array<i64: 1, 2>, scalar_prefetch = 0 : i64, scratch_operands = 0 : i64, tpu.core_type = #tpu.core_type<tc>, window_params = [{transform_indices = @transform_0, window_bounds = array<i64: 32, 16>}, {transform_indices = @transform_1, window_bounds = array<i64: 16, 128>}, {transform_indices = @transform_2, window_bounds = array<i64: 32, 128>}]} {
    %c0 = arith.constant 0 : index
    %c0_0 = arith.constant 0 : index
    %0 = vector.load %arg2[%c0, %c0_0] : memref<32x16xbf16, #tpu.memory_space<vmem>>, vector<32x16xbf16>
    %c0_1 = arith.constant 0 : index
    %c0_2 = arith.constant 0 : index
    %1 = vector.load %arg3[%c0_1, %c0_2] : memref<16x128xbf16, #tpu.memory_space<vmem>>, vector<16x128xbf16>
    %cst = arith.constant dense<0.000000e+00> : vector<32x128xf32>
    %2 = tpu.matmul %0, %1, %cst {dimension_numbers = #tpu.dot_dimension_numbers<[1], [0], [0], [1], [0, 0, 1, 1], [], []>} : vector<32x16xbf16>, vector<16x128xbf16>, vector<32x128xf32> -> vector<32x128xf32>
    %c0_3 = arith.constant 0 : index
    %c0_4 = arith.constant 0 : index
    %3 = vector.load %arg4[%c0_3, %c0_4] : memref<32x128xf32, #tpu.memory_space<vmem>>, vector<32x128xf32>
    tpu.vector_store %arg4[%c0_3, %c0_4], %2 {strides = array<i32>} : memref<32x128xf32, #tpu.memory_space<vmem>>, vector<32x128xf32>,
    return
  }
  func.func @transform_0(%arg0: i32, %arg1: i32) -> (i32, i32) {
    %c0_i32 = arith.constant 0 : i32
    %c0_i32_0 = arith.constant 0 : i32
    return %arg1, %c0_i32 : i32, i32
  }
  func.func @transform_1(%arg0: i32, %arg1: i32) -> (i32, i32) {
    %c0_i32 = arith.constant 0 : i32
    %c0_i32_0 = arith.constant 0 : i32
    return %c0_i32, %arg0 : i32, i32
  }
  func.func @transform_2(%arg0: i32, %arg1: i32) -> (i32, i32) {
    %c0_i32 = arith.constant 0 : i32
    return %arg1, %arg0 : i32, i32
  }
}

</mosaic_0001>

<llo_original>
// kernel: tpu_custom_call.1
$region0: #{tpu_custom_call.1}
  #allocation0 [shape = 'u32[]', space=smem, size = 0x4, offset = 0x4, fixed_abs, tag = 'smem constant byte address 0x4 - core index']
  #allocation1 [shape = 'u32[144,128]{1,0:T(1,128)}', space=vmem, size = 0x12000, scoped, tag = 'internal scratch']
  %s0 = inlined_call_operand.vmem [shape: bf16[64,16], index: 0, kind: input, shape index: {}]
  %s1 = inlined_call_operand.vmem [shape: bf16[16,128], index: 1, kind: input, shape index: {}]
  %s2 = inlined_call_operand.hbm [shape: f32[64,128], index: 2, kind: output, shape index: {}]
  %s3 = sld [smem:[#allocation0]]
  $region41: #{tpu_custom_call.1} parent=0
    _
  %s5 = ssub.s32 1, %s3
  %s6 = scalar_select 0, %s5, %s3
  $region1: #{tpu_custom_call.1} parent=0
    #allocation2 [shape = 'u8[32768]{0}', space=vmem, size = 0x8000, scoped, tag = 'output window, operand 0']
    #allocation3 [shape = 's32[2]{0}', space=sflag, size = 0x8, scoped, tag = 'scoped memory for tpu_custom_call.1']
    %7 = vsyncpa [#allocation3], 0
    %s8 = scalar_lea.sflag [#allocation3], 1
    %9 = vsyncpa %s8, 0
    loop: start=0, step=1, limit=4
    $region2: #{tpu_custom_call.1} parent=1 // loop_pre_header
      _
    $region3: #{tpu_custom_call.1} parent=1 // loop_header
      %s11 = sphi 0, %s15
      %p12 = scmp.ge.s32.totalorder %s11, 4
      %s18 = sphi 0, %s30
      %s19 = sphi 0, %s26
      %s20 = sphi 0, %s18
      %s21 = sphi 0, %s19
      %s22 = sphi 0, %s20
      %s23 = sphi 0, %s21
      %s33 = sphi 0, %s35
      %s36 = sphi 0, %s33
      %s37 = sphi 0, %s36
      %s53 = sphi 0, %s37
      %s59 = sphi 0, %s61
      %s62 = sphi 0, %s59
      %s63 = sphi 0, %s62
      %s79 = sphi 0, %s63
      %s87 = sphi 0, %s89
      %s90 = sphi 0, %s87
      %s91 = sphi 0, %s90
      %s107 = sphi 0, %s91
    $region4: #{tpu_custom_call.1} parent=1 // loop_header_branch
      %14 = sbr.rel (%p12) target = $region8
    $region5: #{tpu_custom_call.1} parent=1 // loop_body
      %s16 = ssub.s32 %s11, 1
      %s17 = ssub.s32 %s11, 2
      %s24 = sadd.s32 1, %s19
      %p25 = scmp.ge.s32.totalorder %s24, 2
      %s26 = scalar_select %p25, 0, %s24
      %s27 = sadd.s32 1, %s18
      %s28 = scalar_select %p25, %s27, %s18
      %p29 = scmp.ge.s32.totalorder %s28, 1
      %s30 = scalar_select %p29, 0, %s28
      %s31 = ssub.s32 %s19, %s26
      %p32 = scmp.eq.s32.totalorder %s31, 0
      %s34 = sadd.s32 %s33, 1
      %s35 = scalar_select %p32, %s33, %s34
      %p38 = pneg %p32
      %p39 = scmp.eq.s32.totalorder %s11, 1
      %p40 = por %p38, %p39
      %p41 = scmp.ne.s32.totalorder %s33, %s36
      %p42 = scmp.eq.s32.totalorder %s11, 0
      %p43 = por %p41, %p42
      %p44 = scmp.ne.s32.totalorder %s33, %s36
      %p45 = scmp.eq.s32.totalorder %s16, 1
      %p46 = por %p44, %p45
      %p47 = scmp.ne.s32.totalorder %s36, %s37
      %p48 = scmp.eq.s32.totalorder %s16, 0
      %p49 = por %p47, %p48
      %p50 = scmp.ne.s32.totalorder %s36, %s37
      %p51 = scmp.eq.s32.totalorder %s17, 1
      %p52 = por %p50, %p51
      %p54 = scmp.ne.s32.totalorder %s37, %s53
      %p55 = scmp.eq.s32.totalorder %s17, 0
      %p56 = por %p54, %p55
      %s57 = ssub.s32 %s18, %s30
      %p58 = scmp.eq.s32.totalorder %s57, 0
      %s60 = sadd.s32 %s59, 1
      %s61 = scalar_select %p58, %s59, %s60
      %p64 = pneg %p58
      %p65 = scmp.eq.s32.totalorder %s11, 1
      %p66 = por %p64, %p65
      %p67 = scmp.ne.s32.totalorder %s59, %s62
      %p68 = scmp.eq.s32.totalorder %s11, 0
      %p69 = por %p67, %p68
      %p70 = scmp.ne.s32.totalorder %s59, %s62
      %p71 = scmp.eq.s32.totalorder %s16, 1
      %p72 = por %p70, %p71
      %p73 = scmp.ne.s32.totalorder %s62, %s63
      %p74 = scmp.eq.s32.totalorder %s16, 0
      %p75 = por %p73, %p74
      %p76 = scmp.ne.s32.totalorder %s62, %s63
      %p77 = scmp.eq.s32.totalorder %s17, 1
      %p78 = por %p76, %p77
      %p80 = scmp.ne.s32.totalorder %s63, %s79
      %p81 = scmp.eq.s32.totalorder %s17, 0
      %p82 = por %p80, %p81
      %s83 = ssub.s32 %s19, %s26
      %s84 = ssub.s32 %s18, %s30
      %s85 = sor.u32 %s83, %s84
      %p86 = scmp.eq.s32.totalorder %s85, 0
      %s88 = sadd.s32 %s87, 1
      %s89 = scalar_select %p86, %s87, %s88
      %p92 = pneg %p86
      %p93 = scmp.eq.s32.totalorder %s11, 1
      %p94 = por %p92, %p93
      %p95 = scmp.ne.s32.totalorder %s87, %s90
      %p96 = scmp.eq.s32.totalorder %s11, 0
      %p97 = por %p95, %p96
      %p98 = scmp.ne.s32.totalorder %s87, %s90
      %p99 = scmp.eq.s32.totalorder %s16, 1
      %p100 = por %p98, %p99
      %p101 = scmp.ne.s32.totalorder %s90, %s91
      %p102 = scmp.eq.s32.totalorder %s16, 0
      %p103 = por %p101, %p102
      %p104 = scmp.ne.s32.totalorder %s90, %s91
      %p105 = scmp.eq.s32.totalorder %s17, 1
      %p106 = por %p104, %p105
      %p108 = scmp.ne.s32.totalorder %s91, %s107
      %p109 = scmp.eq.s32.totalorder %s17, 0
      %p110 = por %p108, %p109
      %p111 = scmp.le.s32.totalorder 1, %s11
      %p112 = scmp.lt.s32.totalorder %s11, 3
      %p113 = pnand %p111, %p112
      %p114 = pneg %p113
      // Predicated region
      $region9: #{tpu_custom_call.1} parent=5 // pred_check
        _
      $region10: #{tpu_custom_call.1} parent=5 // pred_check_branch
        %116 = sbr.rel (%p113) target = $region12
      $region11: #{tpu_custom_call.1} parent=5 // pred_region
        %s117 = ssub.s32 %s11, 1
        // Predicated region
        $region13: #{tpu_custom_call.1} parent=11 // pred_check
          %p118 = pneg %p75
        $region14: #{tpu_custom_call.1} parent=11 // pred_check_branch
          %120 = sbr.rel (%p118) target = $region16
        $region15: #{tpu_custom_call.1} parent=11 // pred_region
          %p121 = scmp.lt.s32.totalorder %s20, 0
          %s122 = scalar_select %p121, %s20, 0
          %s123 = smul.addr %s122, 4
          %s124 = scalar_lea.vmem %s1, %s123
        $region16: #{tpu_custom_call.1} parent=11 // pred_fallthru
          _
      $region12: #{tpu_custom_call.1} parent=5 // pred_fallthru
        _
      %p125 = scmp.lt.s32.totalorder %s11, 2
      // Predicated region
      $region17: #{tpu_custom_call.1} parent=5 // pred_check
        %p126 = pneg %p125
      $region18: #{tpu_custom_call.1} parent=5 // pred_check_branch
        %128 = sbr.rel (%p126) target = $region20
      $region19: #{tpu_custom_call.1} parent=5 // pred_region
        // Predicated region
        $region21: #{tpu_custom_call.1} parent=19 // pred_check
          %p129 = pneg %p43
        $region22: #{tpu_custom_call.1} parent=19 // pred_check_branch
          %131 = sbr.rel (%p129) target = $region24
        $region23: #{tpu_custom_call.1} parent=19 // pred_region
          %s132 = smul.u32 4, %s19
          %p133 = scmp.lt.s32.totalorder %s132, 7
          %s134 = scalar_select %p133, %s132, 7
          %s135 = smul.addr %s134, 4
          %s136 = scalar_lea.vmem %s0, %s135
          %s137 = smul.u32 4, %s19
        $region24: #{tpu_custom_call.1} parent=19 // pred_fallthru
          _
      $region20: #{tpu_custom_call.1} parent=5 // pred_fallthru
        _
      %p138 = scmp.le.s32.totalorder 1, %s11
      %p139 = scmp.lt.s32.totalorder %s11, 3
      %p140 = pnand %p138, %p139
      %p141 = pneg %p140
      // Predicated region
      $region25: #{tpu_custom_call.1} parent=5 // pred_check
        _
      $region26: #{tpu_custom_call.1} parent=5 // pred_check_branch
        %143 = sbr.rel (%p140) target = $region28
      $region27: #{tpu_custom_call.1} parent=5 // pred_region
        %s144 = ssub.s32 %s11, 1
        %s145 = smul.u32 4, %s21
        %p146 = scmp.lt.s32.totalorder %s145, 7
        %s147 = scalar_select %p146, %s145, 7
        %s148 = smul.addr %s147, 4
        %s149 = scalar_lea.vmem %s0, %s148
        %p150 = pneg %p49
        %p151 = pneg %p46
        %p152 = scmp.lt.s32.totalorder %s20, 0
        %s153 = scalar_select %p152, %s20, 0
        %s154 = smul.addr %s153, 4
        %s155 = scalar_lea.vmem %s1, %s154
        %p156 = pneg %p75
        %p157 = pneg %p72
        %p158 = pneg %p103
        %p159 = pneg %p100
        %s160 = sand.u32 %s90, 1
        %s161 = scalar_lea.sflag [#allocation3], %s160
        %s162 = sand.u32 %s90, 1
        %s163 = smul.addr %s162, 32
        %s164 = scalar_lea.vmem [#allocation2], %s163
        %s165 = smul.u32 4, %s21
        %p166 = scmp.lt.s32.totalorder %s165, 7
        %s167 = scalar_select %p166, %s165, 7
        %s168 = smul.addr %s167, 4
        %s169 = scalar_lea.vmem %s0, %s168
        %s170 = smul.u32 4, %s21
        %p171 = scmp.lt.s32.totalorder %s20, 0
        %s172 = scalar_select %p171, %s20, 0
        %s173 = smul.addr %s172, 4
        %s174 = scalar_lea.vmem %s1, %s173
        %s175 = smul.u32 4, %s21
        %v177 = vld [vmem:[%s169] sm:$0xf]
        %v178 = vld [vmem:[%s169 + $0x4] sm:$0xf]
        %v179 = vld [vmem:[%s169 + $0x8] sm:$0xf]
        %v180 = vld [vmem:[%s169 + $0xc] sm:$0xf]
        %v181 = vld [vmem:[%s174] sm:$0xf]
        %v182 = vld [vmem:[%s174 + $0x4] sm:$0xf]
        %v187 = vunpack.c.l.b16 %v177
        %v188 = vunpack.c.l.b16 %v178
        %v189 = vunpack.c.l.b16 %v179
        %v190 = vunpack.c.l.b16 %v180
        %v191 = vpack.c.b16 %v188, %v187
        %v192 = vpack.c.b16 %v190, %v189
        %v195 = vunpack.c.l.b16 %v181
        %v196 = vunpack.c.l.b16 %v182
        %v197 = vpack.c.b16 %v196, %v195
        %vm199 = vcmask 130048
        %v201 = vsel %vm199, %v191, 0
        %v204 = vsel %vm199, %v192, 0
        %206 = vmatprep.subr.bf16.mxu0 0
        %207 = vmatpush1.bf16.msra.mxu0 %v197
        %208 = vmatprep.subr.bf16.mxu0 0
        %209 = vmatpush1.bf16.msra.mxu0 0
        %210 = vmatprep.subr.bf16.mxu0 0
        %211 = vmatpush1.bf16.msra.mxu0 0
        %212 = vmatprep.subr.bf16.mxu0 0
        %213 = vmatpush1.bf16.msra.mxu0 0
        %214 = vmatprep.subr.bf16.mxu0 0
        %215 = vmatpush1.bf16.msra.mxu0 0
        %216 = vmatprep.subr.bf16.mxu0 0
        %217 = vmatpush1.bf16.msra.mxu0 0
        %218 = vmatprep.subr.bf16.mxu0 0
        %219 = vmatpush1.bf16.msra.mxu0 0
        %220 = vmatprep.subr.bf16.mxu0 0
        %221 = vmatpush1.bf16.msra.mxu0 0
        %222 = vmatprep.subr.bf16.mxu0 0
        %223 = vmatpush1.bf16.msra.mxu0 0
        %224 = vmatprep.subr.bf16.mxu0 0
        %225 = vmatpush1.bf16.msra.mxu0 0
        %226 = vmatprep.subr.bf16.mxu0 0
        %227 = vmatpush1.bf16.msra.mxu0 0
        %228 = vmatprep.subr.bf16.mxu0 0
        %229 = vmatpush1.bf16.msra.mxu0 0
        %230 = vmatprep.subr.bf16.mxu0 0
        %231 = vmatpush1.bf16.msra.mxu0 0
        %232 = vmatprep.subr.bf16.mxu0 0
        %233 = vmatpush1.bf16.msra.mxu0 0
        %234 = vmatprep.subr.bf16.mxu0 0
        %235 = vmatpush1.bf16.msra.mxu0 0
        %236 = vmatprep.subr.bf16.mxu0 0
        %237 = vmatpush1.bf16.msra.mxu0 0
        %238 = vmatprep.mubr.bf16.mxu0 0
        %239 = vmatmul.mubr.bf16.gmra.mrb[0].mxu0 %v201
        %v240 = vpop.f32.mrb[0].mxu0
        %v241 = vadd.f32 0.0, %v240
        %v242 = vpop.f32.mrb[0].mxu0
        %v243 = vpop.f32.mrb[0].mxu0
        %v244 = vadd.f32 0.0, %v243
        %v245 = vpop.f32.mrb[0].mxu0
        %246 = vmatprep.mubr.bf16.mxu0 0
        %247 = vmatmul.mubr.bf16.gmra.mrb[0].mxu0 %v204
        %v248 = vpop.f32.mrb[0].mxu0
        %v249 = vadd.f32 0.0, %v248
        %v250 = vpop.f32.mrb[0].mxu0
        %v251 = vpop.f32.mrb[0].mxu0
        %v252 = vadd.f32 0.0, %v251
        %v253 = vpop.f32.mrb[0].mxu0
        %254 = vdwg.mxu0
        %255 = vst [vmem:[%s164] sm:$0xff] %v241
        %256 = vst [vmem:[%s164 + $0x8] sm:$0xff] %v244
        %257 = vst [vmem:[%s164 + $0x10] sm:$0xff] %v249
        %258 = vst [vmem:[%s164 + $0x18] sm:$0xff] %v252
        %s259 = sand.u32 %s90, 1
        %s260 = scalar_lea.sflag [#allocation3], %s259
        %s261 = sand.u32 %s90, 1
        %s262 = smul.addr %s261, 32
        %s263 = scalar_lea.vmem [#allocation2], %s262
        // Predicated region
        $region29: #{tpu_custom_call.1} parent=27 // pred_check
          %p264 = pneg %p100
        $region30: #{tpu_custom_call.1} parent=27 // pred_check_branch
          %266 = sbr.rel (%p264) target = $region32
        $region31: #{tpu_custom_call.1} parent=27 // pred_region
          %s267 = smul.u32 4, %s21
          %s269 = ssub.s32 512, 512
          %270 = vsyncadd %s260, %s269
          %s271 = sadd.s32 %s20, %s267
          %s272 = smul.addr %s271, 128
          %s273 = scalar_lea.hbm %s2, %s272
          %s274 = sshll.u32 %s263, 4
          %s275 = int_to_ptr.vmem [resolvable:$true] %s274
          %280 = dma.vmem_to_hbm [thread:$0]  %s275, 512, %s273, %s260, 128, 128, 8
        $region32: #{tpu_custom_call.1} parent=27 // pred_fallthru
          _
      $region28: #{tpu_custom_call.1} parent=5 // pred_fallthru
        _
      %p281 = scmp.le.s32.totalorder 2, %s11
      // Predicated region
      $region33: #{tpu_custom_call.1} parent=5 // pred_check
        %p282 = pneg %p281
      $region34: #{tpu_custom_call.1} parent=5 // pred_check_branch
        %284 = sbr.rel (%p282) target = $region36
      $region35: #{tpu_custom_call.1} parent=5 // pred_region
        %s285 = ssub.s32 %s11, 2
        // Predicated region
        $region37: #{tpu_custom_call.1} parent=35 // pred_check
          %p286 = pneg %p106
        $region38: #{tpu_custom_call.1} parent=35 // pred_check_branch
          %288 = sbr.rel (%p286) target = $region40
        $region39: #{tpu_custom_call.1} parent=35 // pred_region
          %s289 = sand.u32 %s91, 1
          %s290 = scalar_lea.sflag [#allocation3], %s289
          %s291 = sand.u32 %s91, 1
          %s292 = smul.addr %s291, 32
          %s293 = scalar_lea.vmem [#allocation2], %s292
          %294 = dma.done %s290, 512
        $region40: #{tpu_custom_call.1} parent=35 // pred_fallthru
          _
      $region36: #{tpu_custom_call.1} parent=5 // pred_fallthru
        _
    $region6: #{tpu_custom_call.1} parent=1 // loop_footer
      %s15 = sadd.s32 1, %s11
    $region7: #{tpu_custom_call.1} parent=1 // loop_footer_branch
      %10 = sbr.rel target = $region3
    $region8: #{tpu_custom_call.1} parent=1 // loop_exit
      _
    %295 = vsyncpa [#allocation3], 1
    %s296 = scalar_lea.sflag [#allocation3], 1
    %297 = vsyncpa %s296, 1

</llo_original>
